<compile_context>
chip_gen: v6e
topology: v6e:2x2x1
jax: 0.10.0
libtpu: 0.0.40
codegen_flags: <defaults>
</compile_context>

<pallas_src>
import functools

import jax
import jax.numpy as jnp
from jax.experimental import pallas as pl
from jax.experimental.pallas import tpu as pltpu

BN_EPS = 1e-5


def _round_up(v: int, m: int) -> int:
    return (v + m - 1) // m * m


def _rwpe_fused_kernel(x_ref, pe_ref, w_ref, b_ref, out_ref, *, f_dim: int, c_out: int):
    """Single-store epilogue: out = where(lane < F, x, pe @ W_eff + b_eff).

    W_eff/b_eff are zero-padded on the left by F columns so the matmul result
    already sits at the correct lane offsets; the lane-mask select then drops
    x into lanes [0, F) and the whole (tile_n, F+C_out) tile is stored once.
    """
    pe = pe_ref[...].astype(jnp.float32)
    enc_wide = jnp.dot(pe, w_ref[...], preferred_element_type=jnp.float32)
    enc_wide = enc_wide + b_ref[...].astype(jnp.float32)          # (T, F+C_out)

    x = x_ref[...].astype(jnp.float32)                            # (T, F)
    x_wide = jnp.concatenate(
        [x, jnp.zeros((x.shape[0], c_out), jnp.float32)], axis=1)  # (T, F+C_out)

    lane = jax.lax.broadcasted_iota(jnp.int32, enc_wide.shape, dimension=1)
    merged = jnp.where(lane < f_dim, x_wide, enc_wide)
    out_ref[...] = merged.astype(out_ref.dtype)                   # one full-tile store


def _rwpe_enc_kernel(pe_ref, w_ref, b_ref, out_ref):
    """as_variable=True path: out = pe @ W_eff + b_eff."""
    pe = pe_ref[...].astype(jnp.float32)
    enc = jnp.dot(pe, w_ref[...], preferred_element_type=jnp.float32)
    enc = enc + b_ref[...].astype(jnp.float32)
    out_ref[...] = enc.astype(out_ref.dtype)


def _pick_tile(n: int, tile_n: int) -> int:
    """Largest sublane-aligned row tile <= tile_n that still leaves >= ~4 grid
    steps (so v7x megacore has work on both TensorCores)."""
    n8 = _round_up(max(n, 1), 8)
    cap4 = _round_up(pl.cdiv(max(n, 1), 4), 8)
    return max(8, min(int(tile_n), n8, cap4))


def _maybe_buffered_spec(block_shape, index_map, buffered: bool):
    if buffered:
        return pl.BlockSpec(block_shape, index_map, pipeline_mode=pl.Buffered(3))
    return pl.BlockSpec(block_shape, index_map)


def rw_encoder_forward(x, pos_enc, gamma, beta, W, b, *, as_variable=False, tile_n=4096):
    """JAX/Pallas equivalent of RWEncoder.forward.

    x:        (N, F)      node features (batch.x)
    pos_enc:  (N, C_in)   batch.randomwalkpe
    gamma, beta: (C_in,) or (1, C_in)  BatchNorm1d affine params
    W: (C_in, C_out), b: (C_out,) or (1, C_out)  Linear params
    Returns (new_x, new_pos_enc) mirroring the Batch mutation.
    """
    N, C_in = pos_enc.shape
    C_out = W.shape[1]
    F = x.shape[1]

    gamma = jnp.asarray(gamma, jnp.float32).reshape(1, C_in)
    beta = jnp.asarray(beta, jnp.float32).reshape(1, C_in)
    b = jnp.asarray(b, jnp.float32).reshape(1, C_out)

    # ---- BatchNorm1d (train-mode batch stats), single pass over pos_enc -----
    # var = E[x^2] - mean^2 (clamped at 0 against cancellation); pos_enc is
    # streamed from HBM once instead of twice.
    pe32 = pos_enc.astype(jnp.float32)
    mean = jnp.mean(pe32, axis=0, keepdims=True)                         # (1, C_in)
    mean_sq = jnp.mean(jnp.square(pe32), axis=0, keepdims=True)          # (1, C_in)
    var = jnp.maximum(mean_sq - jnp.square(mean), 0.0)                   # biased variance
    scale = gamma * jax.lax.rsqrt(var + BN_EPS)                          # (1, C_in)

    # Fold BN into the linear layer (kept in f32; kernel is memory bound so the
    # f32 matmul is free and avoids bf16 blow-up when a column variance ~ 0).
    W32 = W.astype(jnp.float32)
    W_eff = W32 * scale.reshape(C_in, 1)                                 # (C_in, C_out)
    b_eff = (beta - mean * scale) @ W32 + b                              # (1, C_out)

    tn = _pick_tile(N, tile_n)
    grid_steps = pl.cdiv(N, tn)
    grid = (grid_steps,)
    # Only worth deepening input buffering when steps are tiny and numerous.
    buffered = (tn <= 512) and (grid_steps >= 8)

    cparams = pltpu.CompilerParams(
        dimension_semantics=("parallel",),
        vmem_limit_bytes=32 * 1024 * 1024,
    )

    if as_variable:
        cost = pl.CostEstimate(
            flops=2 * N * C_in * C_out,
            transcendentals=0,
            bytes_accessed=N * (C_in + C_out) * 4,
        )
        enc = pl.pallas_call(
            _rwpe_enc_kernel,
            out_shape=jax.ShapeDtypeStruct((N, C_out), x.dtype),
            grid=grid,
            in_specs=[
                _maybe_buffered_spec((tn, C_in), lambda i: (i, 0), buffered),
                pl.BlockSpec((C_in, C_out), lambda i: (0, 0)),    # resident across grid steps
                pl.BlockSpec((1, C_out), lambda i: (0, 0)),
            ],
            out_specs=pl.BlockSpec((tn, C_out), lambda i: (i, 0)),
            compiler_params=cparams,
            cost_estimate=cost,
        )(pos_enc, W_eff, b_eff)
        return x, enc

    # Left-pad the effective weight/bias by F zero columns so the matmul emits
    # the full fused-width tile directly (concat fused, no lane shifts).
    W_pad = jnp.concatenate([jnp.zeros((C_in, F), jnp.float32), W_eff], axis=1)  # (C_in, F+C_out)
    b_pad = jnp.concatenate([jnp.zeros((1, F), jnp.float32), b_eff], axis=1)     # (1, F+C_out)

    cost = pl.CostEstimate(
        flops=2 * N * C_in * (F + C_out),
        transcendentals=0,
        bytes_accessed=N * (F + C_in + F + C_out) * 4,
    )

    new_x = pl.pallas_call(
        functools.partial(_rwpe_fused_kernel, f_dim=F, c_out=C_out),
        out_shape=jax.ShapeDtypeStruct((N, F + C_out), x.dtype),
        grid=grid,
        in_specs=[
            _maybe_buffered_spec((tn, F), lambda i: (i, 0), buffered),
            _maybe_buffered_spec((tn, C_in), lambda i: (i, 0), buffered),
            pl.BlockSpec((C_in, F + C_out), lambda i: (0, 0)),    # resident across grid steps
            pl.BlockSpec((1, F + C_out), lambda i: (0, 0)),
        ],
        out_specs=pl.BlockSpec((tn, F + C_out), lambda i: (i, 0)),
        compiler_params=cparams,
        cost_estimate=cost,
    )(x, pos_enc, W_pad, b_pad)
    return new_x, pos_enc


def _reference(x, pos_enc, gamma, beta, W, b):
    mean = jnp.mean(pos_enc, axis=0, keepdims=True)
    var = jnp.mean((pos_enc - mean) ** 2, axis=0, keepdims=True)
    y = (pos_enc - mean) / jnp.sqrt(var + BN_EPS) * gamma.reshape(1, -1) + beta.reshape(1, -1)
    enc = y @ W + b.reshape(1, -1)
    return jnp.concatenate([x, enc], axis=1)


if __name__ == "__main__":
    key = jax.random.PRNGKey(0)
    k1, k2, k3, k4, k5, k6 = jax.random.split(key, 6)

    N = 1000        # number of nodes (not a multiple of the tile -> exercises edge masking)
    F = 11          # existing node-feature dim (batch.x)
    C_IN = 20       # random-walk PE length (in_channels)
    C_OUT = 32      # out_channels

    x = jax.random.normal(k1, (N, F), dtype=jnp.float32)
    pos_enc = jax.random.normal(k2, (N, C_IN), dtype=jnp.float32)

    gamma = 1.0 + 0.1 * jax.random.normal(k5, (C_IN,), dtype=jnp.float32)
    beta = 0.05 * jax.random.normal(k6, (C_IN,), dtype=jnp.float32)
    W = (jax.random.normal(k3, (C_IN, C_OUT), dtype=jnp.float32)
         * (1.0 / jnp.sqrt(C_IN)))
    b = jax.random.normal(k4, (C_OUT,), dtype=jnp.float32) * 0.01

    new_x, _ = rw_encoder_forward(x, pos_enc, gamma, beta, W, b)
    new_x = jax.block_until_ready(new_x)

    ref = _reference(x, pos_enc, gamma, beta, W, b)
    assert new_x.shape == (N, F + C_OUT), new_x.shape
    # x columns are copied exactly (they never pass through the MXU).
    assert bool(jnp.array_equal(new_x[:, :F], x)), "x columns not copied exactly"
    # Encoded columns: f32 matmul with BN folded into weights vs f32 reference.
    assert bool(jnp.allclose(new_x[:, F:], ref[:, F:], atol=1e-3, rtol=1e-3)), \
        "encoded columns mismatch vs reference"

    # as_variable=True path (batch.randomwalkpe = pos_enc).
    _, enc = rw_encoder_forward(x, pos_enc, gamma, beta, W, b, as_variable=True)
    enc = jax.block_until_ready(enc)
    assert enc.shape == (N, C_OUT), enc.shape
    assert bool(jnp.allclose(enc, ref[:, F:], atol=1e-3, rtol=1e-3)), \
        "as_variable encoding mismatch vs reference"

    print("KERNEL_OK")
</pallas_src>

<mosaic_0001>
module attributes {stable_mosaic.version = 11 : i64} {
  func.func @_rwpe_fused_kernel(%arg0: i32, %arg1: memref<256x11xf32, #tpu.memory_space<vmem>>, %arg2: memref<256x20xf32, #tpu.memory_space<vmem>>, %arg3: memref<20x43xf32, #tpu.memory_space<vmem>>, %arg4: memref<1x43xf32, #tpu.memory_space<vmem>>, %arg5: memref<256x43xf32, #tpu.memory_space<vmem>>) attributes {dimension_semantics = [#tpu.dimension_semantics<parallel>], iteration_bounds = array<i64: 4>, scalar_prefetch = 0 : i64, scratch_operands = 0 : i64, tpu.core_type = #tpu.core_type<tc>, window_params = [{transform_indices = @transform_0, window_bounds = array<i64: 256, 11>}, {transform_indices = @transform_1, window_bounds = array<i64: 256, 20>}, {pipeline_mode = #tpu.pipeline_mode<synchronous>, transform_indices = @transform_2, window_bounds = array<i64: 20, 43>}, {pipeline_mode = #tpu.pipeline_mode<synchronous>, transform_indices = @transform_3, window_bounds = array<i64: 1, 43>}, {transform_indices = @transform_4, window_bounds = array<i64: 256, 43>}]} {
    %c0 = arith.constant 0 : index
    %c0_0 = arith.constant 0 : index
    %0 = vector.load %arg2[%c0, %c0_0] : memref<256x20xf32, #tpu.memory_space<vmem>>, vector<256x20xf32>
    %c0_1 = arith.constant 0 : index
    %c0_2 = arith.constant 0 : index
    %1 = vector.load %arg3[%c0_1, %c0_2] : memref<20x43xf32, #tpu.memory_space<vmem>>, vector<20x43xf32>
    %cst = arith.constant dense<0.000000e+00> : vector<256x43xf32>
    %2 = tpu.matmul %0, %1, %cst {dimension_numbers = #tpu.dot_dimension_numbers<[1], [0], [0], [1], [0, 0, 1, 1], [], []>} : vector<256x20xf32>, vector<20x43xf32>, vector<256x43xf32> -> vector<256x43xf32>
    %c0_3 = arith.constant 0 : index
    %c0_4 = arith.constant 0 : index
    %3 = vector.load %arg4[%c0_3, %c0_4] : memref<1x43xf32, #tpu.memory_space<vmem>>, vector<1x43xf32>
    %4 = vector.broadcast %3 : vector<1x43xf32> to vector<256x43xf32>
    %5 = arith.addf %2, %4 : vector<256x43xf32>
    %c0_5 = arith.constant 0 : index
    %c0_6 = arith.constant 0 : index
    %6 = vector.load %arg1[%c0_5, %c0_6] : memref<256x11xf32, #tpu.memory_space<vmem>>, vector<256x11xf32>
    %cst_7 = arith.constant 0.000000e+00 : f32
    %7 = vector.broadcast %cst_7 : f32 to vector<256x32xf32>
    %8 = tpu.concatenate %6, %7 in 1 : vector<256x11xf32>, vector<256x32xf32> -> vector<256x43xf32>
    %9 = tpu.iota {dimensions = array<i32: 1>} : vector<256x43xi32>
    %c11_i32 = arith.constant 11 : i32
    %10 = vector.broadcast %c11_i32 : i32 to vector<256x43xi32>
    %11 = arith.cmpi slt, %9, %10 : vector<256x43xi32>
    %12 = arith.select %11, %8, %5 : vector<256x43xi1>, vector<256x43xf32>
    %c0_8 = arith.constant 0 : index
    %c0_9 = arith.constant 0 : index
    %13 = vector.load %arg5[%c0_8, %c0_9] : memref<256x43xf32, #tpu.memory_space<vmem>>, vector<256x43xf32>
    tpu.vector_store %arg5[%c0_8, %c0_9], %12 {strides = array<i32>} : memref<256x43xf32, #tpu.memory_space<vmem>>, vector<256x43xf32>,
    return
  }
  func.func @transform_0(%arg0: i32) -> (i32, i32) {
    %c0_i32 = arith.constant 0 : i32
    %c0_i32_0 = arith.constant 0 : i32
    return %arg0, %c0_i32 : i32, i32
  }
  func.func @transform_1(%arg0: i32) -> (i32, i32) {
    %c0_i32 = arith.constant 0 : i32
    %c0_i32_0 = arith.constant 0 : i32
    return %arg0, %c0_i32 : i32, i32
  }
  func.func @transform_2(%arg0: i32) -> (i32, i32) {
    %c0_i32 = arith.constant 0 : i32
    %c0_i32_0 = arith.constant 0 : i32
    %c0_i32_1 = arith.constant 0 : i32
    return %c0_i32, %c0_i32_0 : i32, i32
  }
  func.func @transform_3(%arg0: i32) -> (i32, i32) {
    %c0_i32 = arith.constant 0 : i32
    %c0_i32_0 = arith.constant 0 : i32
    %c0_i32_1 = arith.constant 0 : i32
    return %c0_i32, %c0_i32_0 : i32, i32
  }
  func.func @transform_4(%arg0: i32) -> (i32, i32) {
    %c0_i32 = arith.constant 0 : i32
    %c0_i32_0 = arith.constant 0 : i32
    return %arg0, %c0_i32 : i32, i32
  }
}

</mosaic_0001>

<llo_original>
// kernel: tpu_custom_call.1
$region0: #{tpu_custom_call.1}
  #allocation0 [shape = 'u32[]', space=smem, size = 0x4, offset = 0x4, fixed_abs, tag = 'smem constant byte address 0x4 - core index']
  #allocation1 [shape = 'u32[144,128]{1,0:T(1,128)}', space=vmem, size = 0x12000, scoped, tag = 'internal scratch']
  %s0 = inlined_call_operand.vmem [shape: f32[1000,11], index: 0, kind: input, shape index: {}]
  %s1 = inlined_call_operand.vmem [shape: f32[1000,20], index: 1, kind: input, shape index: {}]
  %s2 = inlined_call_operand.vmem [shape: f32[20,43], index: 2, kind: input, shape index: {}]
  %s3 = inlined_call_operand.vmem [shape: f32[1,43], index: 3, kind: input, shape index: {}]
  %s4 = inlined_call_operand.vmem [shape: f32[1000,43], index: 4, kind: output, shape index: {}]
  %s5 = sld [smem:[#allocation0]]
  $region97: #{tpu_custom_call.1} parent=0
    _
  %s7 = ssub.s32 1, %s5
  %s8 = scalar_select 0, %s7, %s5
  $region1: #{tpu_custom_call.1} parent=0
    #allocation2 [shape = 'u8[262144]{0}', space=vmem, size = 0x40000, scoped, tag = 'output window, operand 0']
    loop: start=0, step=1, limit=6
    $region2: #{tpu_custom_call.1} parent=1 // loop_pre_header
      _
    $region3: #{tpu_custom_call.1} parent=1 // loop_header
      %s10 = sphi 0, %s14
      %p11 = scmp.ge.s32.totalorder %s10, 6
      %s20 = sphi 0, %s22
      %s23 = sphi 0, %s20
      %s24 = sphi 0, %s23
      %s40 = sphi 0, %s24
      %s46 = sphi 0, %s48
      %s49 = sphi 0, %s46
      %s50 = sphi 0, %s49
      %s66 = sphi 0, %s50
      %s70 = sphi 0, %s70
      %s72 = sphi 0, %s70
      %s73 = sphi 0, %s72
      %s87 = sphi 0, %s73
      %s91 = sphi 0, %s91
      %s93 = sphi 0, %s91
      %s94 = sphi 0, %s93
      %s108 = sphi 0, %s94
      %s114 = sphi 0, %s116
      %s117 = sphi 0, %s114
      %s118 = sphi 0, %s117
      %s134 = sphi 0, %s118
    $region4: #{tpu_custom_call.1} parent=1 // loop_header_branch
      %13 = sbr.rel (%p11) target = $region8
    $region5: #{tpu_custom_call.1} parent=1 // loop_body
      %s15 = ssub.s32 %s10, 1
      %s16 = ssub.s32 %s10, 2
      %s17 = sadd.s32 %s10, 1
      %s18 = ssub.s32 %s10, %s17
      %p19 = scmp.eq.s32.totalorder %s18, 0
      %s21 = sadd.s32 %s20, 1
      %s22 = scalar_select %p19, %s20, %s21
      %p25 = pneg %p19
      %p26 = scmp.eq.s32.totalorder %s10, 3
      %p27 = por %p25, %p26
      %p28 = scmp.ne.s32.totalorder %s20, %s23
      %p29 = scmp.eq.s32.totalorder %s10, 0
      %p30 = por %p28, %p29
      %p31 = scmp.ne.s32.totalorder %s20, %s23
      %p32 = scmp.eq.s32.totalorder %s15, 3
      %p33 = por %p31, %p32
      %p34 = scmp.ne.s32.totalorder %s23, %s24
      %p35 = scmp.eq.s32.totalorder %s15, 0
      %p36 = por %p34, %p35
      %p37 = scmp.ne.s32.totalorder %s23, %s24
      %p38 = scmp.eq.s32.totalorder %s16, 3
      %p39 = por %p37, %p38
      %p41 = scmp.ne.s32.totalorder %s24, %s40
      %p42 = scmp.eq.s32.totalorder %s16, 0
      %p43 = por %p41, %p42
      %s44 = ssub.s32 %s10, %s17
      %p45 = scmp.eq.s32.totalorder %s44, 0
      %s47 = sadd.s32 %s46, 1
      %s48 = scalar_select %p45, %s46, %s47
      %p51 = pneg %p45
      %p52 = scmp.eq.s32.totalorder %s10, 3
      %p53 = por %p51, %p52
      %p54 = scmp.ne.s32.totalorder %s46, %s49
      %p55 = scmp.eq.s32.totalorder %s10, 0
      %p56 = por %p54, %p55
      %p57 = scmp.ne.s32.totalorder %s46, %s49
      %p58 = scmp.eq.s32.totalorder %s15, 3
      %p59 = por %p57, %p58
      %p60 = scmp.ne.s32.totalorder %s49, %s50
      %p61 = scmp.eq.s32.totalorder %s15, 0
      %p62 = por %p60, %p61
      %p63 = scmp.ne.s32.totalorder %s49, %s50
      %p64 = scmp.eq.s32.totalorder %s16, 3
      %p65 = por %p63, %p64
      %p67 = scmp.ne.s32.totalorder %s50, %s66
      %p68 = scmp.eq.s32.totalorder %s16, 0
      %p69 = por %p67, %p68
      %s71 = sadd.s32 %s70, 1
      %p74 = scmp.eq.s32.totalorder %s10, 3
      %p75 = scmp.ne.s32.totalorder %s70, %s72
      %p76 = scmp.eq.s32.totalorder %s10, 0
      %p77 = por %p75, %p76
      %p78 = scmp.ne.s32.totalorder %s70, %s72
      %p79 = scmp.eq.s32.totalorder %s15, 3
      %p80 = por %p78, %p79
      %p81 = scmp.ne.s32.totalorder %s72, %s73
      %p82 = scmp.eq.s32.totalorder %s15, 0
      %p83 = por %p81, %p82
      %p84 = scmp.ne.s32.totalorder %s72, %s73
      %p85 = scmp.eq.s32.totalorder %s16, 3
      %p86 = por %p84, %p85
      %p88 = scmp.ne.s32.totalorder %s73, %s87
      %p89 = scmp.eq.s32.totalorder %s16, 0
      %p90 = por %p88, %p89
      %s92 = sadd.s32 %s91, 1
      %p95 = scmp.eq.s32.totalorder %s10, 3
      %p96 = scmp.ne.s32.totalorder %s91, %s93
      %p97 = scmp.eq.s32.totalorder %s10, 0
      %p98 = por %p96, %p97
      %p99 = scmp.ne.s32.totalorder %s91, %s93
      %p100 = scmp.eq.s32.totalorder %s15, 3
      %p101 = por %p99, %p100
      %p102 = scmp.ne.s32.totalorder %s93, %s94
      %p103 = scmp.eq.s32.totalorder %s15, 0
      %p104 = por %p102, %p103
      %p105 = scmp.ne.s32.totalorder %s93, %s94
      %p106 = scmp.eq.s32.totalorder %s16, 3
      %p107 = por %p105, %p106
      %p109 = scmp.ne.s32.totalorder %s94, %s108
      %p110 = scmp.eq.s32.totalorder %s16, 0
      %p111 = por %p109, %p110
      %s112 = ssub.s32 %s10, %s17
      %p113 = scmp.eq.s32.totalorder %s112, 0
      %s115 = sadd.s32 %s114, 1
      %s116 = scalar_select %p113, %s114, %s115
      %p119 = pneg %p113
      %p120 = scmp.eq.s32.totalorder %s10, 3
      %p121 = por %p119, %p120
      %p122 = scmp.ne.s32.totalorder %s114, %s117
      %p123 = scmp.eq.s32.totalorder %s10, 0
      %p124 = por %p122, %p123
      %p125 = scmp.ne.s32.totalorder %s114, %s117
      %p126 = scmp.eq.s32.totalorder %s15, 3
      %p127 = por %p125, %p126
      %p128 = scmp.ne.s32.totalorder %s117, %s118
      %p129 = scmp.eq.s32.totalorder %s15, 0
      %p130 = por %p128, %p129
      %p131 = scmp.ne.s32.totalorder %s117, %s118
      %p132 = scmp.eq.s32.totalorder %s16, 3
      %p133 = por %p131, %p132
      %p135 = scmp.ne.s32.totalorder %s118, %s134
      %p136 = scmp.eq.s32.totalorder %s16, 0
      %p137 = por %p135, %p136
      %p138 = scmp.le.s32.totalorder 1, %s10
      %p139 = scmp.lt.s32.totalorder %s10, 5
      %p140 = pnand %p138, %p139
      %p141 = pneg %p140
      // Predicated region
      $region9: #{tpu_custom_call.1} parent=5 // pred_check
        _
      $region10: #{tpu_custom_call.1} parent=5 // pred_check_branch
        %143 = sbr.rel (%p140) target = $region12
      $region11: #{tpu_custom_call.1} parent=5 // pred_region
        %s144 = ssub.s32 %s10, 1
        // Predicated region
        $region13: #{tpu_custom_call.1} parent=11 // pred_check
          %p145 = pneg %p83
        $region14: #{tpu_custom_call.1} parent=11 // pred_check_branch
          %147 = sbr.rel (%p145) target = $region16
        $region15: #{tpu_custom_call.1} parent=11 // pred_region
          _
        $region16: #{tpu_custom_call.1} parent=11 // pred_fallthru
          _
        // Predicated region
        $region17: #{tpu_custom_call.1} parent=11 // pred_check
          %p148 = pneg %p104
        $region18: #{tpu_custom_call.1} parent=11 // pred_check_branch
          %150 = sbr.rel (%p148) target = $region20
        $region19: #{tpu_custom_call.1} parent=11 // pred_region
          _
        $region20: #{tpu_custom_call.1} parent=11 // pred_fallthru
          _
      $region12: #{tpu_custom_call.1} parent=5 // pred_fallthru
        _
      %p151 = scmp.lt.s32.totalorder %s10, 4
      // Predicated region
      $region21: #{tpu_custom_call.1} parent=5 // pred_check
        %p152 = pneg %p151
      $region22: #{tpu_custom_call.1} parent=5 // pred_check_branch
        %154 = sbr.rel (%p152) target = $region24
      $region23: #{tpu_custom_call.1} parent=5 // pred_region
        // Predicated region
        $region25: #{tpu_custom_call.1} parent=23 // pred_check
          %p155 = pneg %p30
        $region26: #{tpu_custom_call.1} parent=23 // pred_check_branch
          %157 = sbr.rel (%p155) target = $region28
        $region27: #{tpu_custom_call.1} parent=23 // pred_region
          %s158 = smul.u32 32, %s10
          %s159 = ssub.s32 125, %s158
          %p160 = scmp.lt.s32.totalorder %s159, 32
          %s161 = scalar_select %p160, %s159, 32
          %s162 = smul.u32 128, %s161
          %p163 = scmp.lt.s32.totalorder %s158, 124
          %s164 = scalar_select %p163, %s158, 124
          %s165 = smul.addr %s164, 8
          %s166 = scalar_lea.vmem %s0, %s165
          %s167 = smul.u32 32, %s10
          %s168 = ssub.s32 125, %s167
          %p169 = scmp.lt.s32.totalorder %s168, 32
          %s170 = scalar_select %p169, %s168, 32
          %s171 = smul.u32 128, %s170
        $region28: #{tpu_custom_call.1} parent=23 // pred_fallthru
          _
        // Predicated region
        $region29: #{tpu_custom_call.1} parent=23 // pred_check
          %p172 = pneg %p56
        $region30: #{tpu_custom_call.1} parent=23 // pred_check_branch
          %174 = sbr.rel (%p172) target = $region32
        $region31: #{tpu_custom_call.1} parent=23 // pred_region
          %s175 = smul.u32 32, %s10
          %s176 = ssub.s32 125, %s175
          %p177 = scmp.lt.s32.totalorder %s176, 32
          %s178 = scalar_select %p177, %s176, 32
          %s179 = smul.u32 128, %s178
          %p180 = scmp.lt.s32.totalorder %s175, 124
          %s181 = scalar_select %p180, %s175, 124
          %s182 = smul.addr %s181, 8
          %s183 = scalar_lea.vmem %s1, %s182
          %s184 = smul.u32 32, %s10
          %s185 = ssub.s32 125, %s184
          %p186 = scmp.lt.s32.totalorder %s185, 32
          %s187 = scalar_select %p186, %s185, 32
          %s188 = smul.u32 128, %s187
        $region32: #{tpu_custom_call.1} parent=23 // pred_fallthru
          _
      $region24: #{tpu_custom_call.1} parent=5 // pred_fallthru
        _
      %p189 = scmp.le.s32.totalorder 1, %s10
      %p190 = scmp.lt.s32.totalorder %s10, 5
      %p191 = pnand %p189, %p190
      %p192 = pneg %p191
      // Predicated region
      $region33: #{tpu_custom_call.1} parent=5 // pred_check
        _
      $region34: #{tpu_custom_call.1} parent=5 // pred_check_branch
        %194 = sbr.rel (%p191) target = $region36
      $region35: #{tpu_custom_call.1} parent=5 // pred_region
        %s195 = ssub.s32 %s10, 1
        %s196 = smul.u32 32, %s15
        %s197 = ssub.s32 125, %s196
        %p198 = scmp.lt.s32.totalorder %s197, 32
        %s199 = scalar_select %p198, %s197, 32
        %s200 = smul.u32 128, %s199
        %p201 = scmp.lt.s32.totalorder %s196, 124
        %s202 = scalar_select %p201, %s196, 124
        %s203 = smul.addr %s202, 8
        %s204 = scalar_lea.vmem %s0, %s203
        %p205 = pneg %p36
        %p206 = pneg %p33
        %s207 = smul.u32 32, %s15
        %s208 = ssub.s32 125, %s207
        %p209 = scmp.lt.s32.totalorder %s208, 32
        %s210 = scalar_select %p209, %s208, 32
        %s211 = smul.u32 128, %s210
        %p212 = scmp.lt.s32.totalorder %s207, 124
        %s213 = scalar_select %p212, %s207, 124
        %s214 = smul.addr %s213, 8
        %s215 = scalar_lea.vmem %s1, %s214
        %p216 = pneg %p62
        %p217 = pneg %p59
        %p218 = pneg %p83
        %p219 = pneg %p80
        %p220 = pneg %p104
        %p221 = pneg %p101
        %p222 = pneg %p130
        %p223 = pneg %p127
        %s224 = sand.u32 %s117, 1
        %s225 = sand.u32 %s117, 1
        %s226 = smul.addr %s225, 256
        %s227 = scalar_lea.vmem [#allocation2], %s226
        %s228 = smul.u32 32, %s15
        %s229 = ssub.s32 125, %s228
        %p230 = scmp.lt.s32.totalorder %s229, 32
        %s231 = scalar_select %p230, %s229, 32
        %s232 = smul.u32 128, %s231
        %p233 = scmp.lt.s32.totalorder %s228, 124
        %s234 = scalar_select %p233, %s228, 124
        %s235 = smul.addr %s234, 8
        %s236 = scalar_lea.vmem %s0, %s235
        %s237 = smul.u32 32, %s15
        %s238 = ssub.s32 125, %s237
        %p239 = scmp.lt.s32.totalorder %s238, 32
        %s240 = scalar_select %p239, %s238, 32
        %s241 = smul.u32 128, %s240
        %s242 = smul.u32 32, %s15
        %s243 = ssub.s32 125, %s242
        %p244 = scmp.lt.s32.totalorder %s243, 32
        %s245 = scalar_select %p244, %s243, 32
        %s246 = smul.u32 128, %s245
        %p247 = scmp.lt.s32.totalorder %s242, 124
        %s248 = scalar_select %p247, %s242, 124
        %s249 = smul.addr %s248, 8
        %s250 = scalar_lea.vmem %s1, %s249
        %s251 = smul.u32 32, %s15
        %s252 = ssub.s32 125, %s251
        %p253 = scmp.lt.s32.totalorder %s252, 32
        %s254 = scalar_select %p253, %s252, 32
        %s255 = smul.u32 128, %s254
        %s256 = smul.u32 32, %s15
        %s257 = ssub.s32 125, %s256
        %p258 = scmp.lt.s32.totalorder %s257, 32
        %s259 = scalar_select %p258, %s257, 32
        %s260 = smul.u32 128, %s259
        %v261 = vld [vmem:[%s250] sm:$0xff]
        %v262 = vld [vmem:[%s250 + $0x8] sm:$0xff]
        %v263 = vld [vmem:[%s250 + $0x10] sm:$0xff]
        %v264 = vld [vmem:[%s250 + $0x18] sm:$0xff]
        %v265 = vld [vmem:[%s250 + $0x20] sm:$0xff]
        %v266 = vld [vmem:[%s250 + $0x28] sm:$0xff]
        %v267 = vld [vmem:[%s250 + $0x30] sm:$0xff]
        %v268 = vld [vmem:[%s250 + $0x38] sm:$0xff]
        %v269 = vld [vmem:[%s250 + $0x40] sm:$0xff]
        %v270 = vld [vmem:[%s250 + $0x48] sm:$0xff]
        %v271 = vld [vmem:[%s250 + $0x50] sm:$0xff]
        %v272 = vld [vmem:[%s250 + $0x58] sm:$0xff]
        %v273 = vld [vmem:[%s250 + $0x60] sm:$0xff]
        %v274 = vld [vmem:[%s250 + $0x68] sm:$0xff]
        %v275 = vld [vmem:[%s250 + $0x70] sm:$0xff]
        %v276 = vld [vmem:[%s250 + $0x78] sm:$0xff]
        %v277 = vld [vmem:[%s250 + $0x80] sm:$0xff]
        %v278 = vld [vmem:[%s250 + $0x88] sm:$0xff]
        %v279 = vld [vmem:[%s250 + $0x90] sm:$0xff]
        %v280 = vld [vmem:[%s250 + $0x98] sm:$0xff]
        %v281 = vld [vmem:[%s250 + $0xa0] sm:$0xff]
        %v282 = vld [vmem:[%s250 + $0xa8] sm:$0xff]
        %v283 = vld [vmem:[%s250 + $0xb0] sm:$0xff]
        %v284 = vld [vmem:[%s250 + $0xb8] sm:$0xff]
        %v285 = vld [vmem:[%s250 + $0xc0] sm:$0xff]
        %v286 = vld [vmem:[%s250 + $0xc8] sm:$0xff]
        %v287 = vld [vmem:[%s250 + $0xd0] sm:$0xff]
        %v288 = vld [vmem:[%s250 + $0xd8] sm:$0xff]
        %v289 = vld [vmem:[%s250 + $0xe0] sm:$0xff]
        %v290 = vld [vmem:[%s250 + $0xe8] sm:$0xff]
        %v291 = vld [vmem:[%s250 + $0xf0] sm:$0xff]
        %v292 = vld [vmem:[%s250 + $0xf8] sm:$0xff]
        %v293 = vld [vmem:[%s2] sm:$0xff]
        %v294 = vld [vmem:[%s2 + $0x8] sm:$0xff]
        %v295 = vld [vmem:[%s2 + $0x10] sm:$0xf]
        %v296 = vld [vmem:[%s3] sm:$0x1]
        %v298 = vlaneseq
        %v299 = vshrl.u32 %v298, 7
        %v300 = vsub.s32 0, %v299
        %v301 = vrot.slane %v296, %v300
        %vm303 = vcmask 162816
        %v305 = vsel %vm303, %v261, 0
        %v308 = vsel %vm303, %v262, 0
        %v311 = vsel %vm303, %v263, 0
        %v314 = vsel %vm303, %v264, 0
        %v317 = vsel %vm303, %v265, 0
        %v320 = vsel %vm303, %v266, 0
        %v323 = vsel %vm303, %v267, 0
        %v326 = vsel %vm303, %v268, 0
        %v329 = vsel %vm303, %v269, 0
        %v332 = vsel %vm303, %v270, 0
        %v335 = vsel %vm303, %v271, 0
        %v338 = vsel %vm303, %v272, 0
        %v341 = vsel %vm303, %v273, 0
        %v344 = vsel %vm303, %v274, 0
        %v347 = vsel %vm303, %v275, 0
        %v350 = vsel %vm303, %v276, 0
        %v353 = vsel %vm303, %v277, 0
        %v356 = vsel %vm303, %v278, 0
        %v359 = vsel %vm303, %v279, 0
        %v362 = vsel %vm303, %v280, 0
        %v365 = vsel %vm303, %v281, 0
        %v368 = vsel %vm303, %v282, 0
        %v371 = vsel %vm303, %v283, 0
        %v374 = vsel %vm303, %v284, 0
        %v377 = vsel %vm303, %v285, 0
        %v380 = vsel %vm303, %v286, 0
        %v383 = vsel %vm303, %v287, 0
        %v386 = vsel %vm303, %v288, 0
        %v389 = vsel %vm303, %v289, 0
        %v392 = vsel %vm303, %v290, 0
        %v395 = vsel %vm303, %v291, 0
        %v398 = vsel %vm303, %v292, 0
        %vm400 = vcmask 1043456
        %v402 = vsel %vm400, %v295, 0
        %404 = vmatprep.subr.mxu0 0.0
        %405 = vmatpush1.msra.mxu0 0.0
        %406 = vmatprep.subr.mxu0 0.0
        %407 = vmatpush1.msra.mxu0 0.0
        %408 = vmatprep.subr.mxu0 0.0
        %409 = vmatpush1.msra.mxu0 0.0
        %410 = vmatprep.subr.mxu0 0.0
        %411 = vmatpush1.msra.mxu0 0.0
        %412 = vmatprep.subr.mxu0 0.0
        %413 = vmatpush1.msra.mxu0 0.0
        %414 = vmatprep.subr.mxu0 0.0
        %415 = vmatpush1.msra.mxu0 0.0
        %416 = vmatprep.subr.mxu0 0.0
        %417 = vmatpush1.msra.mxu0 0.0
        %418 = vmatprep.subr.mxu0 0.0
        %419 = vmatpush1.msra.mxu0 0.0
        %420 = vmatprep.subr.mxu0 0.0
        %421 = vmatpush1.msra.mxu0 0.0
        %422 = vmatprep.subr.mxu0 0.0
        %423 = vmatpush1.msra.mxu0 0.0
        %424 = vmatprep.subr.mxu0 0.0
        %425 = vmatpush1.msra.mxu0 0.0
        %426 = vmatprep.subr.mxu0 0.0
        %427 = vmatpush1.msra.mxu0 0.0
        %428 = vmatprep.subr.mxu0 0.0
        %429 = vmatpush1.msra.mxu0 0.0
        %430 = vmatprep.subr.mxu0 0.0
        %431 = vmatpush1.msra.mxu0 %v402
        %432 = vmatprep.subr.mxu0 0.0
        %433 = vmatpush1.msra.mxu0 %v294
        %434 = vmatprep.subr.mxu0 0.0
        %435 = vmatpush1.msra.mxu0 %v293
        %436 = vmatprep.subr.mxu0 0.0
        %437 = vmatpush2.msra.mxu0 0.0
        %438 = vmatprep.subr.mxu0 0.0
        %439 = vmatpush2.msra.mxu0 0.0
        %440 = vmatprep.subr.mxu0 0.0
        %441 = vmatpush2.msra.mxu0 0.0
        %442 = vmatprep.subr.mxu0 0.0
        %443 = vmatpush2.msra.mxu0 0.0
        %444 = vmatprep.subr.mxu0 0.0
        %445 = vmatpush2.msra.mxu0 0.0
        %446 = vmatprep.subr.mxu0 0.0
        %447 = vmatpush2.msra.mxu0 0.0
        %448 = vmatprep.subr.mxu0 0.0
        %449 = vmatpush2.msra.mxu0 0.0
        %450 = vmatprep.subr.mxu0 0.0
        %451 = vmatpush2.msra.mxu0 0.0
        %452 = vmatprep.subr.mxu0 0.0
        %453 = vmatpush2.msra.mxu0 0.0
        %454 = vmatprep.subr.mxu0 0.0
        %455 = vmatpush2.msra.mxu0 0.0
        %456 = vmatprep.subr.mxu0 0.0
        %457 = vmatpush2.msra.mxu0 0.0
        %458 = vmatprep.subr.mxu0 0.0
        %459 = vmatpush2.msra.mxu0 0.0
        %460 = vmatprep.subr.mxu0 0.0
        %461 = vmatpush2.msra.mxu0 0.0
        %462 = vmatprep.subr.mxu0 0.0
        %463 = vmatpush2.msra.mxu0 0.0
        %464 = vmatprep.subr.mxu0 0.0
        %465 = vmatpush2.msra.mxu0 0.0
        %466 = vmatprep.subr.mxu0 0.0
        %467 = vmatpush2.msra.mxu0 0.0
        %468 = vmatprep.mubr.f32.mxu0 0.0
        %469 = vmatmul.mubr.f32.gmra.mxu0 %v305
        %v470 = vpop.f32.mrf.mxu0
        %v471 = vadd.f32 %v301, %v470
        %v472 = vpop.f32.mrf.mxu0
        %473 = vmatprep.mubr.f32.mxu0 0.0
        %474 = vmatmul.mubr.f32.gmra.mxu0 %v308
        %v475 = vpop.f32.mrf.mxu0
        %v476 = vadd.f32 %v301, %v475
        %v477 = vpop.f32.mrf.mxu0
        %478 = vmatprep.mubr.f32.mxu0 0.0
        %479 = vmatmul.mubr.f32.gmra.mxu0 %v311
        %v480 = vpop.f32.mrf.mxu0
        %v481 = vadd.f32 %v301, %v480
        %v482 = vpop.f32.mrf.mxu0
        %483 = vmatprep.mubr.f32.mxu0 0.0
        %484 = vmatmul.mubr.f32.gmra.mxu0 %v314
        %v485 = vpop.f32.mrf.mxu0
        %v486 = vadd.f32 %v301, %v485
        %v487 = vpop.f32.mrf.mxu0
        %488 = vmatprep.mubr.f32.mxu0 0.0
        %489 = vmatmul.mubr.f32.gmra.mxu0 %v317
        %v490 = vpop.f32.mrf.mxu0
        %v491 = vadd.f32 %v301, %v490
        %v492 = vpop.f32.mrf.mxu0
        %493 = vmatprep.mubr.f32.mxu0 0.0
        %494 = vmatmul.mubr.f32.gmra.mxu0 %v320
        %v495 = vpop.f32.mrf.mxu0
        %v496 = vadd.f32 %v301, %v495
        %v497 = vpop.f32.mrf.mxu0
        %498 = vmatprep.mubr.f32.mxu0 0.0
        %499 = vmatmul.mubr.f32.gmra.mxu0 %v323
        %v500 = vpop.f32.mrf.mxu0
        %v501 = vadd.f32 %v301, %v500
        %v502 = vpop.f32.mrf.mxu0
        %503 = vmatprep.mubr.f32.mxu0 0.0
        %504 = vmatmul.mubr.f32.gmra.mxu0 %v326
        %v505 = vpop.f32.mrf.mxu0
        %v506 = vadd.f32 %v301, %v505
        %v507 = vpop.f32.mrf.mxu0
        %508 = vmatprep.mubr.f32.mxu0 0.0
        %509 = vmatmul.mubr.f32.gmra.mxu0 %v329
        %v510 = vpop.f32.mrf.mxu0
        %v511 = vadd.f32 %v301, %v510
        %v512 = vpop.f32.mrf.mxu0
        %513 = vmatprep.mubr.f32.mxu0 0.0
        %514 = vmatmul.mubr.f32.gmra.mxu0 %v332
        %v515 = vpop.f32.mrf.mxu0
        %v516 = vadd.f32 %v301, %v515
        %v517 = vpop.f32.mrf.mxu0
        %518 = vmatprep.mubr.f32.mxu0 0.0
        %519 = vmatmul.mubr.f32.gmra.mxu0 %v335
        %v520 = vpop.f32.mrf.mxu0
        %v521 = vadd.f32 %v301, %v520
        %v522 = vpop.f32.mrf.mxu0
        %523 = vmatprep.mubr.f32.mxu0 0.0
        %524 = vmatmul.mubr.f32.gmra.mxu0 %v338
        %v525 = vpop.f32.mrf.mxu0
        %v526 = vadd.f32 %v301, %v525
        %v527 = vpop.f32.mrf.mxu0
        %528 = vmatprep.mubr.f32.mxu0 0.0
        %529 = vmatmul.mubr.f32.gmra.mxu0 %v341
        %v530 = vpop.f32.mrf.mxu0
        %v531 = vadd.f32 %v301, %v530
        %v532 = vpop.f32.mrf.mxu0
        %533 = vmatprep.mubr.f32.mxu0 0.0
        %534 = vmatmul.mubr.f32.gmra.mxu0 %v344
        %v535 = vpop.f32.mrf.mxu0
        %v536 = vadd.f32 %v301, %v535
        %v537 = vpop.f32.mrf.mxu0
        %538 = vmatprep.mubr.f32.mxu0 0.0
        %539 = vmatmul.mubr.f32.gmra.mxu0 %v347
        %v540 = vpop.f32.mrf.mxu0
        %v541 = vadd.f32 %v301, %v540
        %v542 = vpop.f32.mrf.mxu0
        %543 = vmatprep.mubr.f32.mxu0 0.0
        %544 = vmatmul.mubr.f32.gmra.mxu0 %v350
        %v545 = vpop.f32.mrf.mxu0
        %v546 = vadd.f32 %v301, %v545
        %v547 = vpop.f32.mrf.mxu0
        %548 = vmatprep.mubr.f32.mxu0 0.0
        %549 = vmatmul.mubr.f32.gmra.mxu0 %v353
        %v550 = vpop.f32.mrf.mxu0
        %v551 = vadd.f32 %v301, %v550
        %v552 = vpop.f32.mrf.mxu0
        %553 = vmatprep.mubr.f32.mxu0 0.0
        %554 = vmatmul.mubr.f32.gmra.mxu0 %v356
        %v555 = vpop.f32.mrf.mxu0
        %v556 = vadd.f32 %v301, %v555
        %v557 = vpop.f32.mrf.mxu0
        %558 = vmatprep.mubr.f32.mxu0 0.0
        %559 = vmatmul.mubr.f32.gmra.mxu0 %v359
        %v560 = vpop.f32.mrf.mxu0
        %v561 = vadd.f32 %v301, %v560
        %v562 = vpop.f32.mrf.mxu0
        %563 = vmatprep.mubr.f32.mxu0 0.0
        %564 = vmatmul.mubr.f32.gmra.mxu0 %v362
        %v565 = vpop.f32.mrf.mxu0
        %v566 = vadd.f32 %v301, %v565
        %v567 = vpop.f32.mrf.mxu0
        %568 = vmatprep.mubr.f32.mxu0 0.0
        %569 = vmatmul.mubr.f32.gmra.mxu0 %v365
        %v570 = vpop.f32.mrf.mxu0
        %v571 = vadd.f32 %v301, %v570
        %v572 = vpop.f32.mrf.mxu0
        %573 = vmatprep.mubr.f32.mxu0 0.0
        %574 = vmatmul.mubr.f32.gmra.mxu0 %v368
        %v575 = vpop.f32.mrf.mxu0
        %v576 = vadd.f32 %v301, %v575
        %v577 = vpop.f32.mrf.mxu0
        %578 = vmatprep.mubr.f32.mxu0 0.0
        %579 = vmatmul.mubr.f32.gmra.mxu0 %v371
        %v580 = vpop.f32.mrf.mxu0
        %v581 = vadd.f32 %v301, %v580
        %v582 = vpop.f32.mrf.mxu0
        %583 = vmatprep.mubr.f32.mxu0 0.0
        %584 = vmatmul.mubr.f32.gmra.mxu0 %v374
        %v585 = vpop.f32.mrf.mxu0
        %v586 = vadd.f32 %v301, %v585
        %v587 = vpop.f32.mrf.mxu0
        %588 = vmatprep.mubr.f32.mxu0 0.0
        %589 = vmatmul.mubr.f32.gmra.mxu0 %v377
        %v590 = vpop.f32.mrf.mxu0
        %v591 = vadd.f32 %v301, %v590
        %v592 = vpop.f32.mrf.mxu0
        %593 = vmatprep.mubr.f32.mxu0 0.0
        %594 = vmatmul.mubr.f32.gmra.mxu0 %v380
        %v595 = vpop.f32.mrf.mxu0
        %v596 = vadd.f32 %v301, %v595
        %v597 = vpop.f32.mrf.mxu0
        %598 = vmatprep.mubr.f32.mxu0 0.0
        %599 = vmatmul.mubr.f32.gmra.mxu0 %v383
        %v600 = vpop.f32.mrf.mxu0
        %v601 = vadd.f32 %v301, %v600
        %v602 = vpop.f32.mrf.mxu0
        %603 = vmatprep.mubr.f32.mxu0 0.0
        %604 = vmatmul.mubr.f32.gmra.mxu0 %v386
        %v605 = vpop.f32.mrf.mxu0
        %v606 = vadd.f32 %v301, %v605
        %v607 = vpop.f32.mrf.mxu0
        %608 = vmatprep.mubr.f32.mxu0 0.0
        %609 = vmatmul.mubr.f32.gmra.mxu0 %v389
        %v610 = vpop.f32.mrf.mxu0
        %v611 = vadd.f32 %v301, %v610
        %v612 = vpop.f32.mrf.mxu0
        %613 = vmatprep.mubr.f32.mxu0 0.0
        %614 = vmatmul.mubr.f32.gmra.mxu0 %v392
        %v615 = vpop.f32.mrf.mxu0
        %v616 = vadd.f32 %v301, %v615
        %v617 = vpop.f32.mrf.mxu0
        %618 = vmatprep.mubr.f32.mxu0 0.0
        %619 = vmatmul.mubr.f32.gmra.mxu0 %v395
        %v620 = vpop.f32.mrf.mxu0
        %v621 = vadd.f32 %v301, %v620
        %v622 = vpop.f32.mrf.mxu0
        %623 = vmatprep.mubr.f32.mxu0 0.0
        %624 = vmatmul.mubr.f32.gmra.mxu0 %v398
        %v625 = vpop.f32.mrf.mxu0
        %v626 = vadd.f32 %v301, %v625
        %v627 = vpop.f32.mrf.mxu0
        %628 = vdwg.mxu0
        %v629 = vld [vmem:[%s236] sm:$0xff]
        %v630 = vld [vmem:[%s236 + $0x8] sm:$0xff]
        %v631 = vld [vmem:[%s236 + $0x10] sm:$0xff]
        %v632 = vld [vmem:[%s236 + $0x18] sm:$0xff]
        %v633 = vld [vmem:[%s236 + $0x20] sm:$0xff]
        %v634 = vld [vmem:[%s236 + $0x28] sm:$0xff]
        %v635 = vld [vmem:[%s236 + $0x30] sm:$0xff]
        %v636 = vld [vmem:[%s236 + $0x38] sm:$0xff]
        %v637 = vld [vmem:[%s236 + $0x40] sm:$0xff]
        %v638 = vld [vmem:[%s236 + $0x48] sm:$0xff]
        %v639 = vld [vmem:[%s236 + $0x50] sm:$0xff]
        %v640 = vld [vmem:[%s236 + $0x58] sm:$0xff]
        %v641 = vld [vmem:[%s236 + $0x60] sm:$0xff]
        %v642 = vld [vmem:[%s236 + $0x68] sm:$0xff]
        %v643 = vld [vmem:[%s236 + $0x70] sm:$0xff]
        %v644 = vld [vmem:[%s236 + $0x78] sm:$0xff]
        %v645 = vld [vmem:[%s236 + $0x80] sm:$0xff]
        %v646 = vld [vmem:[%s236 + $0x88] sm:$0xff]
        %v647 = vld [vmem:[%s236 + $0x90] sm:$0xff]
        %v648 = vld [vmem:[%s236 + $0x98] sm:$0xff]
        %v649 = vld [vmem:[%s236 + $0xa0] sm:$0xff]
        %v650 = vld [vmem:[%s236 + $0xa8] sm:$0xff]
        %v651 = vld [vmem:[%s236 + $0xb0] sm:$0xff]
        %v652 = vld [vmem:[%s236 + $0xb8] sm:$0xff]
        %v653 = vld [vmem:[%s236 + $0xc0] sm:$0xff]
        %v654 = vld [vmem:[%s236 + $0xc8] sm:$0xff]
        %v655 = vld [vmem:[%s236 + $0xd0] sm:$0xff]
        %v656 = vld [vmem:[%s236 + $0xd8] sm:$0xff]
        %v657 = vld [vmem:[%s236 + $0xe0] sm:$0xff]
        %v658 = vld [vmem:[%s236 + $0xe8] sm:$0xff]
        %v659 = vld [vmem:[%s236 + $0xf0] sm:$0xff]
        %v660 = vld [vmem:[%s236 + $0xf8] sm:$0xff]
        %vm661 = vcmask 89088
        %v662 = vsel %vm661, %v629, 0.0
        %v663 = vsel %vm661, %v630, 0.0
        %v664 = vsel %vm661, %v631, 0.0
        %v665 = vsel %vm661, %v632, 0.0
        %v666 = vsel %vm661, %v633, 0.0
        %v667 = vsel %vm661, %v634, 0.0
        %v668 = vsel %vm661, %v635, 0.0
        %v669 = vsel %vm661, %v636, 0.0
        %v670 = vsel %vm661, %v637, 0.0
        %v671 = vsel %vm661, %v638, 0.0
        %v672 = vsel %vm661, %v639, 0.0
        %v673 = vsel %vm661, %v640, 0.0
        %v674 = vsel %vm661, %v641, 0.0
        %v675 = vsel %vm661, %v642, 0.0
        %v676 = vsel %vm661, %v643, 0.0
        %v677 = vsel %vm661, %v644, 0.0
        %v678 = vsel %vm661, %v645, 0.0
        %v679 = vsel %vm661, %v646, 0.0
        %v680 = vsel %vm661, %v647, 0.0
        %v681 = vsel %vm661, %v648, 0.0
        %v682 = vsel %vm661, %v649, 0.0
        %v683 = vsel %vm661, %v650, 0.0
        %v684 = vsel %vm661, %v651, 0.0
        %v685 = vsel %vm661, %v652, 0.0
        %v686 = vsel %vm661, %v653, 0.0
        %v687 = vsel %vm661, %v654, 0.0
        %v688 = vsel %vm661, %v655, 0.0
        %v689 = vsel %vm661, %v656, 0.0
        %v690 = vsel %vm661, %v657, 0.0
        %v691 = vsel %vm661, %v658, 0.0
        %v692 = vsel %vm661, %v659, 0.0
        %v693 = vsel %vm661, %v660, 0.0
        %v694 = vlaneseq
        %v695 = vand.u32 %v694, 127
        %vm696 = vcmp.lt.s32.totalorder %v695, 11
        %v697 = vsel %vm696, %v662, %v471
        %v698 = vsel %vm696, %v663, %v476
        %v699 = vsel %vm696, %v664, %v481
        %v700 = vsel %vm696, %v665, %v486
        %v701 = vsel %vm696, %v666, %v491
        %v702 = vsel %vm696, %v667, %v496
        %v703 = vsel %vm696, %v668, %v501
        %v704 = vsel %vm696, %v669, %v506
        %v705 = vsel %vm696, %v670, %v511
        %v706 = vsel %vm696, %v671, %v516
        %v707 = vsel %vm696, %v672, %v521
        %v708 = vsel %vm696, %v673, %v526
        %v709 = vsel %vm696, %v674, %v531
        %v710 = vsel %vm696, %v675, %v536
        %v711 = vsel %vm696, %v676, %v541
        %v712 = vsel %vm696, %v677, %v546
        %v713 = vsel %vm696, %v678, %v551
        %v714 = vsel %vm696, %v679, %v556
        %v715 = vsel %vm696, %v680, %v561
        %v716 = vsel %vm696, %v681, %v566
        %v717 = vsel %vm696, %v682, %v571
        %v718 = vsel %vm696, %v683, %v576
        %v719 = vsel %vm696, %v684, %v581
        %v720 = vsel %vm696, %v685, %v586
        %v721 = vsel %vm696, %v686, %v591
        %v722 = vsel %vm696, %v687, %v596
        %v723 = vsel %vm696, %v688, %v601
        %v724 = vsel %vm696, %v689, %v606
        %v725 = vsel %vm696, %v690, %v611
        %v726 = vsel %vm696, %v691, %v616
        %v727 = vsel %vm696, %v692, %v621
        %v728 = vsel %vm696, %v693, %v626
        %vm729 = vcmask 351232
        %730 = vst.msk [vmem:[%s227] sm:$0xff] %vm729, %v697
        %731 = vst.msk [vmem:[%s227 + $0x8] sm:$0xff] %vm729, %v698
        %732 = vst.msk [vmem:[%s227 + $0x10] sm:$0xff] %vm729, %v699
        %733 = vst.msk [vmem:[%s227 + $0x18] sm:$0xff] %vm729, %v700
        %734 = vst.msk [vmem:[%s227 + $0x20] sm:$0xff] %vm729, %v701
        %735 = vst.msk [vmem:[%s227 + $0x28] sm:$0xff] %vm729, %v702
        %736 = vst.msk [vmem:[%s227 + $0x30] sm:$0xff] %vm729, %v703
        %737 = vst.msk [vmem:[%s227 + $0x38] sm:$0xff] %vm729, %v704
        %738 = vst.msk [vmem:[%s227 + $0x40] sm:$0xff] %vm729, %v705
        %739 = vst.msk [vmem:[%s227 + $0x48] sm:$0xff] %vm729, %v706
        %740 = vst.msk [vmem:[%s227 + $0x50] sm:$0xff] %vm729, %v707
        %741 = vst.msk [vmem:[%s227 + $0x58] sm:$0xff] %vm729, %v708
        %742 = vst.msk [vmem:[%s227 + $0x60] sm:$0xff] %vm729, %v709
        %743 = vst.msk [vmem:[%s227 + $0x68] sm:$0xff] %vm729, %v710
        %744 = vst.msk [vmem:[%s227 + $0x70] sm:$0xff] %vm729, %v711
        %745 = vst.msk [vmem:[%s227 + $0x78] sm:$0xff] %vm729, %v712
        %746 = vst.msk [vmem:[%s227 + $0x80] sm:$0xff] %vm729, %v713
        %747 = vst.msk [vmem:[%s227 + $0x88] sm:$0xff] %vm729, %v714
        %748 = vst.msk [vmem:[%s227 + $0x90] sm:$0xff] %vm729, %v715
        %749 = vst.msk [vmem:[%s227 + $0x98] sm:$0xff] %vm729, %v716
        %750 = vst.msk [vmem:[%s227 + $0xa0] sm:$0xff] %vm729, %v717
        %751 = vst.msk [vmem:[%s227 + $0xa8] sm:$0xff] %vm729, %v718
        %752 = vst.msk [vmem:[%s227 + $0xb0] sm:$0xff] %vm729, %v719
        %753 = vst.msk [vmem:[%s227 + $0xb8] sm:$0xff] %vm729, %v720
        %754 = vst.msk [vmem:[%s227 + $0xc0] sm:$0xff] %vm729, %v721
        %755 = vst.msk [vmem:[%s227 + $0xc8] sm:$0xff] %vm729, %v722
        %756 = vst.msk [vmem:[%s227 + $0xd0] sm:$0xff] %vm729, %v723
        %757 = vst.msk [vmem:[%s227 + $0xd8] sm:$0xff] %vm729, %v724
        %758 = vst.msk [vmem:[%s227 + $0xe0] sm:$0xff] %vm729, %v725
        %759 = vst.msk [vmem:[%s227 + $0xe8] sm:$0xff] %vm729, %v726
        %760 = vst.msk [vmem:[%s227 + $0xf0] sm:$0xff] %vm729, %v727
        %761 = vst.msk [vmem:[%s227 + $0xf8] sm:$0xff] %vm729, %v728
        %s762 = sand.u32 %s117, 1
        %s763 = sand.u32 %s117, 1
        %s764 = smul.addr %s763, 256
        %s765 = scalar_lea.vmem [#allocation2], %s764
        // Predicated region
        $region37: #{tpu_custom_call.1} parent=35 // pred_check
          %p766 = pneg %p127
        $region38: #{tpu_custom_call.1} parent=35 // pred_check_branch
          %768 = sbr.rel (%p766) target = $region40
        $region39: #{tpu_custom_call.1} parent=35 // pred_region
          %s769 = smul.u32 32, %s15
          %s770 = ssub.s32 125, %s769
          %p771 = scmp.lt.s32.totalorder %s770, 32
          %s772 = scalar_select %p771, %s770, 32
          %s773 = smul.u32 128, %s772
          %p774 = scmp.ne.s32.totalorder 0, %s773
          %s775 = smul.addr %s769, 8
          %s776 = scalar_lea.vmem %s4, %s775
          // Predicated region
          $region41: #{tpu_custom_call.1} parent=39 // pred_check
            %p777 = pneg %p774
          $region42: #{tpu_custom_call.1} parent=39 // pred_check_branch
            %779 = sbr.rel (%p777) target = $region44
          $region43: #{tpu_custom_call.1} parent=39 // pred_region
            // Predicated region
            $region45: #{tpu_custom_call.1} parent=43 // pred_check
              _
            $region46: #{tpu_custom_call.1} parent=43 // pred_check_branch
              %781 = sbr.rel (0) target = $region48
            $region47: #{tpu_custom_call.1} parent=43 // pred_region
              // Predicated region
              $region67: #{tpu_custom_call.1} parent=47 // pred_check
                _
              $region68: #{tpu_custom_call.1} parent=47 // pred_check_branch
                %893 = sbr.rel (0) target = $region70
              $region69: #{tpu_custom_call.1} parent=47 // pred_region
                %s894 = sshrl.u32 %s772, 5
                // While loop
                $region71: #{tpu_custom_call.1} parent=69 // loop_pre_header
                  _
                $region72: #{tpu_custom_call.1} parent=69 // loop_header
                  %s896 = sphi 0, %s898
                  %p897 = scmp.ge.s32.totalorder %s896, %s894
                  %s901 = sphi 0, %s970
                  %s902 = sphi %s765, %s973
                  %s903 = sphi %s776, %s974
                $region73: #{tpu_custom_call.1} parent=69 // loop_header_branch
                  %900 = sbr.rel (%p897) target = $region77
                $region74: #{tpu_custom_call.1} parent=69 // loop_body
                  %v904 = vld [vmem:[%s902] sm:$0xff]
                  %905 = vst [vmem:[%s903] sm:$0xff] %v904
                  %v906 = vld [vmem:[%s902 + $0x8] sm:$0xff]
                  %907 = vst [vmem:[%s903 + $0x8] sm:$0xff] %v906
                  %v908 = vld [vmem:[%s902 + $0x10] sm:$0xff]
                  %909 = vst [vmem:[%s903 + $0x10] sm:$0xff] %v908
                  %v910 = vld [vmem:[%s902 + $0x18] sm:$0xff]
                  %911 = vst [vmem:[%s903 + $0x18] sm:$0xff] %v910
                  %v912 = vld [vmem:[%s902 + $0x20] sm:$0xff]
                  %913 = vst [vmem:[%s903 + $0x20] sm:$0xff] %v912
                  %v914 = vld [vmem:[%s902 + $0x28] sm:$0xff]
                  %915 = vst [vmem:[%s903 + $0x28] sm:$0xff] %v914
                  %v916 = vld [vmem:[%s902 + $0x30] sm:$0xff]
                  %917 = vst [vmem:[%s903 + $0x30] sm:$0xff] %v916
                  %v918 = vld [vmem:[%s902 + $0x38] sm:$0xff]
                  %919 = vst [vmem:[%s903 + $0x38] sm:$0xff] %v918
                  %v920 = vld [vmem:[%s902 + $0x40] sm:$0xff]
                  %921 = vst [vmem:[%s903 + $0x40] sm:$0xff] %v920
                  %v922 = vld [vmem:[%s902 + $0x48] sm:$0xff]
                  %923 = vst [vmem:[%s903 + $0x48] sm:$0xff] %v922
                  %v924 = vld [vmem:[%s902 + $0x50] sm:$0xff]
                  %925 = vst [vmem:[%s903 + $0x50] sm:$0xff] %v924
                  %v926 = vld [vmem:[%s902 + $0x58] sm:$0xff]
                  %927 = vst [vmem:[%s903 + $0x58] sm:$0xff] %v926
                  %v928 = vld [vmem:[%s902 + $0x60] sm:$0xff]
                  %929 = vst [vmem:[%s903 + $0x60] sm:$0xff] %v928
                  %v930 = vld [vmem:[%s902 + $0x68] sm:$0xff]
                  %931 = vst [vmem:[%s903 + $0x68] sm:$0xff] %v930
                  %v932 = vld [vmem:[%s902 + $0x70] sm:$0xff]
                  %933 = vst [vmem:[%s903 + $0x70] sm:$0xff] %v932
                  %v934 = vld [vmem:[%s902 + $0x78] sm:$0xff]
                  %935 = vst [vmem:[%s903 + $0x78] sm:$0xff] %v934
                  %v936 = vld [vmem:[%s902 + $0x80] sm:$0xff]
                  %937 = vst [vmem:[%s903 + $0x80] sm:$0xff] %v936
                  %v938 = vld [vmem:[%s902 + $0x88] sm:$0xff]
                  %939 = vst [vmem:[%s903 + $0x88] sm:$0xff] %v938
                  %v940 = vld [vmem:[%s902 + $0x90] sm:$0xff]
                  %941 = vst [vmem:[%s903 + $0x90] sm:$0xff] %v940
                  %v942 = vld [vmem:[%s902 + $0x98] sm:$0xff]
                  %943 = vst [vmem:[%s903 + $0x98] sm:$0xff] %v942
                  %v944 = vld [vmem:[%s902 + $0xa0] sm:$0xff]
                  %945 = vst [vmem:[%s903 + $0xa0] sm:$0xff] %v944
                  %v946 = vld [vmem:[%s902 + $0xa8] sm:$0xff]
                  %947 = vst [vmem:[%s903 + $0xa8] sm:$0xff] %v946
                  %v948 = vld [vmem:[%s902 + $0xb0] sm:$0xff]
                  %949 = vst [vmem:[%s903 + $0xb0] sm:$0xff] %v948
                  %v950 = vld [vmem:[%s902 + $0xb8] sm:$0xff]
                  %951 = vst [vmem:[%s903 + $0xb8] sm:$0xff] %v950
                  %v952 = vld [vmem:[%s902 + $0xc0] sm:$0xff]
                  %953 = vst [vmem:[%s903 + $0xc0] sm:$0xff] %v952
                  %v954 = vld [vmem:[%s902 + $0xc8] sm:$0xff]
                  %955 = vst [vmem:[%s903 + $0xc8] sm:$0xff] %v954
                  %v956 = vld [vmem:[%s902 + $0xd0] sm:$0xff]
                  %957 = vst [vmem:[%s903 + $0xd0] sm:$0xff] %v956
                  %v958 = vld [vmem:[%s902 + $0xd8] sm:$0xff]
                  %959 = vst [vmem:[%s903 + $0xd8] sm:$0xff] %v958
                  %v960 = vld [vmem:[%s902 + $0xe0] sm:$0xff]
                  %961 = vst [vmem:[%s903 + $0xe0] sm:$0xff] %v960
                  %v962 = vld [vmem:[%s902 + $0xe8] sm:$0xff]
                  %963 = vst [vmem:[%s903 + $0xe8] sm:$0xff] %v962
                  %v964 = vld [vmem:[%s902 + $0xf0] sm:$0xff]
                  %965 = vst [vmem:[%s903 + $0xf0] sm:$0xff] %v964
                  %v966 = vld [vmem:[%s902 + $0xf8] sm:$0xff]
                  %967 = vst [vmem:[%s903 + $0xf8] sm:$0xff] %v966
                  %s968 = sadd.s32 1, %s901
                  %p969 = scmp.ge.s32.totalorder %s968, %s894
                  %s970 = scalar_select %p969, 0, %s968
                  %s971 = smul.u32 %s970, 256
                  %s972 = smul.u32 %s970, 256
                  %s973 = scalar_lea.vmem %s765, %s971 [#allocation2]
                  %s974 = scalar_lea.vmem %s776, %s972
                $region75: #{tpu_custom_call.1} parent=69 // loop_footer
                  %s898 = sadd.s32 %s896, 1
                $region76: #{tpu_custom_call.1} parent=69 // loop_footer_branch
                  %895 = sbr.rel target = $region72
                $region77: #{tpu_custom_call.1} parent=69 // loop_exit
                  _
                %s975 = sshrl.u32 %s772, 5
                %s976 = sand.u32 %s772, 31
                %s977 = smul.u32 %s975, 32
                %s978 = smul.u32 8, %s977
                %s979 = scalar_lea.vmem %s765, %s978 [#allocation2]
                %s980 = smul.u32 8, %s977
                %s981 = scalar_lea.vmem %s776, %s980
                // While loop
                $region78: #{tpu_custom_call.1} parent=69 // loop_pre_header
                  _
                $region79: #{tpu_custom_call.1} parent=69 // loop_header
                  %s983 = sphi 0, %s985
                  %p984 = scmp.ge.s32.totalorder %s983, %s976
                  %s988 = sphi 0, %s995
                  %s989 = sphi %s979, %s998
                  %s990 = sphi %s981, %s999
                $region80: #{tpu_custom_call.1} parent=69 // loop_header_branch
                  %987 = sbr.rel (%p984) target = $region84
                $region81: #{tpu_custom_call.1} parent=69 // loop_body
                  %v991 = vld [vmem:[%s989] sm:$0xff]
                  %992 = vst [vmem:[%s990] sm:$0xff] %v991
                  %s993 = sadd.s32 1, %s988
                  %p994 = scmp.ge.s32.totalorder %s993, %s976
                  %s995 = scalar_select %p994, 0, %s993
                  %s996 = smul.u32 %s995, 8
                  %s997 = smul.u32 %s995, 8
                  %s998 = scalar_lea.vmem %s979, %s996 [#allocation2]
                  %s999 = scalar_lea.vmem %s981, %s997
                $region82: #{tpu_custom_call.1} parent=69 // loop_footer
                  %s985 = sadd.s32 %s983, 1
                $region83: #{tpu_custom_call.1} parent=69 // loop_footer_branch
                  %982 = sbr.rel target = $region79
                $region84: #{tpu_custom_call.1} parent=69 // loop_exit
                  _
              $region70: #{tpu_custom_call.1} parent=47 // pred_fallthru
                _
              // Predicated region
              $region85: #{tpu_custom_call.1} parent=47 // pred_check
                _
              $region86: #{tpu_custom_call.1} parent=47 // pred_check_branch
                %1001 = sbr.rel target = $region88
              $region87: #{tpu_custom_call.1} parent=47 // pred_region
                _
              $region88: #{tpu_custom_call.1} parent=47 // pred_fallthru
                _
            $region48: #{tpu_custom_call.1} parent=43 // pred_fallthru
              _
            // Predicated region
            $region49: #{tpu_custom_call.1} parent=43 // pred_check
              _
            $region50: #{tpu_custom_call.1} parent=43 // pred_check_branch
              %783 = sbr.rel target = $region52
            $region51: #{tpu_custom_call.1} parent=43 // pred_region
              %s785 = ssub.s32 256, 1
              %s786 = sshrl.u32 %s772, 5
              // While loop
              $region53: #{tpu_custom_call.1} parent=51 // loop_pre_header
                _
              $region54: #{tpu_custom_call.1} parent=51 // loop_header
                %s788 = sphi 0, %s790
                %p789 = scmp.ge.s32.totalorder %s788, %s786
                %s793 = sphi 0, %s862
                %s794 = sphi %s765, %s865
                %s795 = sphi %s776, %s866
              $region55: #{tpu_custom_call.1} parent=51 // loop_header_branch
                %792 = sbr.rel (%p789) target = $region59
              $region56: #{tpu_custom_call.1} parent=51 // loop_body
                %v796 = vld [vmem:[%s794] sm:%s785]
                %797 = vst [vmem:[%s795] sm:%s785] %v796
                %v798 = vld [vmem:[%s794 + $0x8] sm:%s785]
                %799 = vst [vmem:[%s795 + $0x8] sm:%s785] %v798
                %v800 = vld [vmem:[%s794 + $0x10] sm:%s785]
                %801 = vst [vmem:[%s795 + $0x10] sm:%s785] %v800
                %v802 = vld [vmem:[%s794 + $0x18] sm:%s785]
                %803 = vst [vmem:[%s795 + $0x18] sm:%s785] %v802
                %v804 = vld [vmem:[%s794 + $0x20] sm:%s785]
                %805 = vst [vmem:[%s795 + $0x20] sm:%s785] %v804
                %v806 = vld [vmem:[%s794 + $0x28] sm:%s785]
                %807 = vst [vmem:[%s795 + $0x28] sm:%s785] %v806
                %v808 = vld [vmem:[%s794 + $0x30] sm:%s785]
                %809 = vst [vmem:[%s795 + $0x30] sm:%s785] %v808
                %v810 = vld [vmem:[%s794 + $0x38] sm:%s785]
                %811 = vst [vmem:[%s795 + $0x38] sm:%s785] %v810
                %v812 = vld [vmem:[%s794 + $0x40] sm:%s785]
                %813 = vst [vmem:[%s795 + $0x40] sm:%s785] %v812
                %v814 = vld [vmem:[%s794 + $0x48] sm:%s785]
                %815 = vst [vmem:[%s795 + $0x48] sm:%s785] %v814
                %v816 = vld [vmem:[%s794 + $0x50] sm:%s785]
                %817 = vst [vmem:[%s795 + $0x50] sm:%s785] %v816
                %v818 = vld [vmem:[%s794 + $0x58] sm:%s785]
                %819 = vst [vmem:[%s795 + $0x58] sm:%s785] %v818
                %v820 = vld [vmem:[%s794 + $0x60] sm:%s785]
                %821 = vst [vmem:[%s795 + $0x60] sm:%s785] %v820
                %v822 = vld [vmem:[%s794 + $0x68] sm:%s785]
                %823 = vst [vmem:[%s795 + $0x68] sm:%s785] %v822
                %v824 = vld [vmem:[%s794 + $0x70] sm:%s785]
                %825 = vst [vmem:[%s795 + $0x70] sm:%s785] %v824
                %v826 = vld [vmem:[%s794 + $0x78] sm:%s785]
                %827 = vst [vmem:[%s795 + $0x78] sm:%s785] %v826
                %v828 = vld [vmem:[%s794 + $0x80] sm:%s785]
                %829 = vst [vmem:[%s795 + $0x80] sm:%s785] %v828
                %v830 = vld [vmem:[%s794 + $0x88] sm:%s785]
                %831 = vst [vmem:[%s795 + $0x88] sm:%s785] %v830
                %v832 = vld [vmem:[%s794 + $0x90] sm:%s785]
                %833 = vst [vmem:[%s795 + $0x90] sm:%s785] %v832
                %v834 = vld [vmem:[%s794 + $0x98] sm:%s785]
                %835 = vst [vmem:[%s795 + $0x98] sm:%s785] %v834
                %v836 = vld [vmem:[%s794 + $0xa0] sm:%s785]
                %837 = vst [vmem:[%s795 + $0xa0] sm:%s785] %v836
                %v838 = vld [vmem:[%s794 + $0xa8] sm:%s785]
                %839 = vst [vmem:[%s795 + $0xa8] sm:%s785] %v838
                %v840 = vld [vmem:[%s794 + $0xb0] sm:%s785]
                %841 = vst [vmem:[%s795 + $0xb0] sm:%s785] %v840
                %v842 = vld [vmem:[%s794 + $0xb8] sm:%s785]
                %843 = vst [vmem:[%s795 + $0xb8] sm:%s785] %v842
                %v844 = vld [vmem:[%s794 + $0xc0] sm:%s785]
                %845 = vst [vmem:[%s795 + $0xc0] sm:%s785] %v844
                %v846 = vld [vmem:[%s794 + $0xc8] sm:%s785]
                %847 = vst [vmem:[%s795 + $0xc8] sm:%s785] %v846
                %v848 = vld [vmem:[%s794 + $0xd0] sm:%s785]
                %849 = vst [vmem:[%s795 + $0xd0] sm:%s785] %v848
                %v850 = vld [vmem:[%s794 + $0xd8] sm:%s785]
                %851 = vst [vmem:[%s795 + $0xd8] sm:%s785] %v850
                %v852 = vld [vmem:[%s794 + $0xe0] sm:%s785]
                %853 = vst [vmem:[%s795 + $0xe0] sm:%s785] %v852
                %v854 = vld [vmem:[%s794 + $0xe8] sm:%s785]
                %855 = vst [vmem:[%s795 + $0xe8] sm:%s785] %v854
                %v856 = vld [vmem:[%s794 + $0xf0] sm:%s785]
                %857 = vst [vmem:[%s795 + $0xf0] sm:%s785] %v856
                %v858 = vld [vmem:[%s794 + $0xf8] sm:%s785]
                %859 = vst [vmem:[%s795 + $0xf8] sm:%s785] %v858
                %s860 = sadd.s32 1, %s793
                %p861 = scmp.ge.s32.totalorder %s860, %s786
                %s862 = scalar_select %p861, 0, %s860
                %s863 = smul.u32 %s862, 256
                %s864 = smul.u32 %s862, 256
                %s865 = scalar_lea.vmem %s765, %s863 [#allocation2]
                %s866 = scalar_lea.vmem %s776, %s864
              $region57: #{tpu_custom_call.1} parent=51 // loop_footer
                %s790 = sadd.s32 %s788, 1
              $region58: #{tpu_custom_call.1} parent=51 // loop_footer_branch
                %787 = sbr.rel target = $region54
              $region59: #{tpu_custom_call.1} parent=51 // loop_exit
                _
              %s867 = sshrl.u32 %s772, 5
              %s868 = sand.u32 %s772, 31
              %s869 = smul.u32 %s867, 32
              %s870 = smul.u32 8, %s869
              %s871 = scalar_lea.vmem %s765, %s870 [#allocation2]
              %s872 = smul.u32 8, %s869
              %s873 = scalar_lea.vmem %s776, %s872
              // While loop
              $region60: #{tpu_custom_call.1} parent=51 // loop_pre_header
                _
              $region61: #{tpu_custom_call.1} parent=51 // loop_header
                %s875 = sphi 0, %s877
                %p876 = scmp.ge.s32.totalorder %s875, %s868
                %s880 = sphi 0, %s887
                %s881 = sphi %s871, %s890
                %s882 = sphi %s873, %s891
              $region62: #{tpu_custom_call.1} parent=51 // loop_header_branch
                %879 = sbr.rel (%p876) target = $region66
              $region63: #{tpu_custom_call.1} parent=51 // loop_body
                %v883 = vld [vmem:[%s881] sm:%s785]
                %884 = vst [vmem:[%s882] sm:%s785] %v883
                %s885 = sadd.s32 1, %s880
                %p886 = scmp.ge.s32.totalorder %s885, %s868
                %s887 = scalar_select %p886, 0, %s885
                %s888 = smul.u32 %s887, 8
                %s889 = smul.u32 %s887, 8
                %s890 = scalar_lea.vmem %s871, %s888 [#allocation2]
                %s891 = scalar_lea.vmem %s873, %s889
              $region64: #{tpu_custom_call.1} parent=51 // loop_footer
                %s877 = sadd.s32 %s875, 1
              $region65: #{tpu_custom_call.1} parent=51 // loop_footer_branch
                %874 = sbr.rel target = $region61
              $region66: #{tpu_custom_call.1} parent=51 // loop_exit
                _
            $region52: #{tpu_custom_call.1} parent=43 // pred_fallthru
              _
          $region44: #{tpu_custom_call.1} parent=39 // pred_fallthru
            _
          %1002 = vnop
        $region40: #{tpu_custom_call.1} parent=35 // pred_fallthru
          _
      $region36: #{tpu_custom_call.1} parent=5 // pred_fallthru
        _
      %p1003 = scmp.le.s32.totalorder 2, %s10
      // Predicated region
      $region89: #{tpu_custom_call.1} parent=5 // pred_check
        %p1004 = pneg %p1003
      $region90: #{tpu_custom_call.1} parent=5 // pred_check_branch
        %1006 = sbr.rel (%p1004) target = $region92
      $region91: #{tpu_custom_call.1} parent=5 // pred_region
        %s1007 = ssub.s32 %s10, 2
        // Predicated region
        $region93: #{tpu_custom_call.1} parent=91 // pred_check
          %p1008 = pneg %p133
        $region94: #{tpu_custom_call.1} parent=91 // pred_check_branch
          %1010 = sbr.rel (%p1008) target = $region96
        $region95: #{tpu_custom_call.1} parent=91 // pred_region
          %s1011 = sand.u32 %s118, 1
          %s1012 = sand.u32 %s118, 1
          %s1013 = smul.addr %s1012, 256
          %s1014 = scalar_lea.vmem [#allocation2], %s1013
        $region96: #{tpu_custom_call.1} parent=91 // pred_fallthru
          _
      $region92: #{tpu_custom_call.1} parent=5 // pred_fallthru
        _
    $region6: #{tpu_custom_call.1} parent=1 // loop_footer
      %s14 = sadd.s32 1, %s10
    $region7: #{tpu_custom_call.1} parent=1 // loop_footer_branch
      %9 = sbr.rel target = $region3
    $region8: #{tpu_custom_call.1} parent=1 // loop_exit
      _

</llo_original>
